<compile_context>
chip_gen: v5e
topology: v5e:2x2
jax: 0.10.0
libtpu: 0.0.40
codegen_flags: <defaults>
</compile_context>

<pallas_src>
import jax
import jax.numpy as jnp
from jax.experimental import pallas as pl
from jax.experimental.pallas import tpu as pltpu

_SUBLANE = 8          # batch-tile granularity (f32 sublane rule)
_SMALL_BATCH = 2048   # below this, plain XLA beats pad -> pallas_call -> slice


def _round_up(n, m):
    return ((n + m - 1) // m) * m


def _mlp_kernel(x_ref, w1_ref, b1_ref, w2_ref, b2_ref, w3_ref, b3_ref, o_ref):
    """One (TB, in_dim) batch tile through fc1 -> ReLU -> fc2 -> ReLU -> fc3.

    Weights/biases use constant index_maps, so they are DMA'd once and stay
    resident in VMEM across all grid steps.  All math is f32 with f32 MXU
    accumulation; Mosaic pads the tiny feature dims (6/32/16/1) in-vreg.
    """
    x = x_ref[...]                                                      # (TB, in)
    h1 = jnp.dot(x, w1_ref[...], preferred_element_type=jnp.float32)   # (TB, h1)
    h1 = jnp.maximum(h1 + b1_ref[...], 0.0)
    h2 = jnp.dot(h1, w2_ref[...], preferred_element_type=jnp.float32)  # (TB, h2)
    h2 = jnp.maximum(h2 + b2_ref[...], 0.0)
    h3 = jnp.dot(h2, w3_ref[...], preferred_element_type=jnp.float32)  # (TB, out)
    o_ref[...] = (h3 + b3_ref[...]).astype(o_ref.dtype)


def price_predictor_forward(x, params, *, tile_batch=1024, use_pallas=None):
    """x: (B, input_dim) float -> (B, output_dim), matching PricePredictor.forward."""
    x = jnp.asarray(x, jnp.float32)
    w1 = jnp.asarray(params["w1"], jnp.float32)
    w2 = jnp.asarray(params["w2"], jnp.float32)
    w3 = jnp.asarray(params["w3"], jnp.float32)
    b1 = jnp.asarray(params["b1"], jnp.float32).reshape(1, -1)
    b2 = jnp.asarray(params["b2"], jnp.float32).reshape(1, -1)
    b3 = jnp.asarray(params["b3"], jnp.float32).reshape(1, -1)

    B, in_dim = x.shape
    h1_dim, h2_dim, out_dim = w1.shape[1], w2.shape[1], w3.shape[1]

    if use_pallas is None:
        use_pallas = B >= _SMALL_BATCH
    if not use_pallas:
        # Tiny batches: XLA fuses a 6->32->16->1 MLP fine; skip pad/launch cost.
        h1 = jnp.maximum(x @ w1 + b1, 0.0)
        h2 = jnp.maximum(h1 @ w2 + b2, 0.0)
        return h2 @ w3 + b3

    # Batch tiling: TB a multiple of 8 (sublane rule), batch padded only up to
    # a tile multiple.  If a single tile would swallow the whole padded batch
    # and it is large enough to split, halve it so a v7x megacore can shard the
    # grid across its two TensorCores.
    TB = _round_up(min(tile_batch, B), _SUBLANE)
    B_pad = _round_up(B, TB)
    if B_pad == TB and TB >= 32 * _SUBLANE:
        TB = _round_up(TB // 2, _SUBLANE)
        B_pad = _round_up(B, TB)
    n_tiles = B_pad // TB

    x_p = x if B_pad == B else jnp.pad(x, ((0, B_pad - B), (0, 0)))

    out_p = pl.pallas_call(
        _mlp_kernel,
        out_shape=jax.ShapeDtypeStruct((B_pad, out_dim), jnp.float32),
        grid=(n_tiles,),
        in_specs=[
            # x: tiled over batch at its logical feature width (last block dim
            # equals the full array dim -> legal, no lane padding, no extra DMA
            # bytes).
            pl.BlockSpec((TB, in_dim), lambda i: (i, 0)),
            # Weights / biases: full (tiny) arrays, resident across all steps.
            # (pl.Buffered(1) would shave ~1 KiB of double-buffering; skipped
            # as it is negligible at these sizes.)
            pl.BlockSpec((in_dim, h1_dim), lambda i: (0, 0)),
            pl.BlockSpec((1, h1_dim), lambda i: (0, 0)),
            pl.BlockSpec((h1_dim, h2_dim), lambda i: (0, 0)),
            pl.BlockSpec((1, h2_dim), lambda i: (0, 0)),
            pl.BlockSpec((h2_dim, out_dim), lambda i: (0, 0)),
            pl.BlockSpec((1, out_dim), lambda i: (0, 0)),
        ],
        # Logical-width output tile: writeback is exactly B_pad*out_dim*4 bytes.
        out_specs=pl.BlockSpec((TB, out_dim), lambda i: (i, 0)),
        compiler_params=pltpu.CompilerParams(
            dimension_semantics=("parallel",),  # shard batch tiles across TCs (v7x)
        ),
    )(x_p, w1, b1, w2, b2, w3, b3)

    return out_p[:B] if B_pad != B else out_p


def init_params(key, input_dim=6, hidden1=32, hidden2=16, output_dim=1):
    """nn.Linear(in, out) has weight (out, in); we store the transpose (in, out)
    so the kernel computes x @ W.  Biases stored as (1, out) rows."""
    keys = jax.random.split(key, 6)

    def linear(kw, kb, fan_in, fan_out):
        bound = 1.0 / jnp.sqrt(fan_in)
        w = jax.random.uniform(kw, (fan_in, fan_out), jnp.float32, -bound, bound)
        b = jax.random.uniform(kb, (1, fan_out), jnp.float32, -bound, bound)
        return w, b

    w1, b1 = linear(keys[0], keys[1], input_dim, hidden1)
    w2, b2 = linear(keys[2], keys[3], hidden1, hidden2)
    w3, b3 = linear(keys[4], keys[5], hidden2, output_dim)
    return {"w1": w1, "b1": b1, "w2": w2, "b2": b2, "w3": w3, "b3": b3}


def reference_forward(x, params):
    h1 = jnp.maximum(x @ params["w1"] + params["b1"], 0.0)
    h2 = jnp.maximum(h1 @ params["w2"] + params["b2"], 0.0)
    return h2 @ params["w3"] + params["b3"]


if __name__ == "__main__":
    key = jax.random.PRNGKey(0)
    k_params, k_x_small, k_x_big = jax.random.split(key, 3)

    input_dim, hidden1, hidden2, output_dim = 6, 32, 16, 1
    params = init_params(k_params, input_dim, hidden1, hidden2, output_dim)

    # 1) Small batch, Pallas path forced so the kernel is always exercised.
    x_small = jax.random.normal(k_x_small, (8, input_dim), jnp.float32)
    out_small = jax.block_until_ready(
        price_predictor_forward(x_small, params, use_pallas=True))
    ref_small = reference_forward(x_small, params)
    assert out_small.shape == (8, output_dim), out_small.shape
    assert jnp.allclose(out_small, ref_small, atol=1e-4, rtol=1e-5), (out_small, ref_small)

    # 2) Larger batch through the auto path: multi-tile grid (n_tiles >= 2).
    x_big = jax.random.normal(k_x_big, (2048, input_dim), jnp.float32)
    out_big = jax.block_until_ready(price_predictor_forward(x_big, params))
    ref_big = reference_forward(x_big, params)
    assert out_big.shape == (2048, output_dim), out_big.shape
    assert jnp.allclose(out_big, ref_big, atol=1e-4, rtol=1e-5)

    # 3) Auto small-batch fallback (plain XLA path) stays numerically identical.
    out_fb = jax.block_until_ready(price_predictor_forward(x_small, params))
    assert jnp.allclose(out_fb, ref_small, atol=1e-5, rtol=1e-5)

    print("KERNEL_OK")
</pallas_src>

<mosaic_0001>
module attributes {stable_mosaic.version = 11 : i64} {
  func.func @_mlp_kernel(%arg0: i32, %arg1: memref<8x6xf32, #tpu.memory_space<vmem>>, %arg2: memref<6x32xf32, #tpu.memory_space<vmem>>, %arg3: memref<1x32xf32, #tpu.memory_space<vmem>>, %arg4: memref<32x16xf32, #tpu.memory_space<vmem>>, %arg5: memref<1x16xf32, #tpu.memory_space<vmem>>, %arg6: memref<16x1xf32, #tpu.memory_space<vmem>>, %arg7: memref<1x1xf32, #tpu.memory_space<vmem>>, %arg8: memref<8x1xf32, #tpu.memory_space<vmem>>) attributes {dimension_semantics = [#tpu.dimension_semantics<parallel>], iteration_bounds = array<i64: 1>, scalar_prefetch = 0 : i64, scratch_operands = 0 : i64, tpu.core_type = #tpu.core_type<tc>, window_params = [{transform_indices = @transform_0, window_bounds = array<i64: 8, 6>}, {pipeline_mode = #tpu.pipeline_mode<synchronous>, transform_indices = @transform_1, window_bounds = array<i64: 6, 32>}, {pipeline_mode = #tpu.pipeline_mode<synchronous>, transform_indices = @transform_2, window_bounds = array<i64: 1, 32>}, {pipeline_mode = #tpu.pipeline_mode<synchronous>, transform_indices = @transform_3, window_bounds = array<i64: 32, 16>}, {pipeline_mode = #tpu.pipeline_mode<synchronous>, transform_indices = @transform_4, window_bounds = array<i64: 1, 16>}, {pipeline_mode = #tpu.pipeline_mode<synchronous>, transform_indices = @transform_5, window_bounds = array<i64: 16, 1>}, {pipeline_mode = #tpu.pipeline_mode<synchronous>, transform_indices = @transform_6, window_bounds = array<i64: 1, 1>}, {transform_indices = @transform_7, window_bounds = array<i64: 8, 1>}]} {
    %c0 = arith.constant 0 : index
    %c0_0 = arith.constant 0 : index
    %0 = vector.load %arg1[%c0, %c0_0] : memref<8x6xf32, #tpu.memory_space<vmem>>, vector<8x6xf32>
    %c0_1 = arith.constant 0 : index
    %c0_2 = arith.constant 0 : index
    %1 = vector.load %arg2[%c0_1, %c0_2] : memref<6x32xf32, #tpu.memory_space<vmem>>, vector<6x32xf32>
    %cst = arith.constant dense<0.000000e+00> : vector<8x32xf32>
    %2 = tpu.matmul %0, %1, %cst {dimension_numbers = #tpu.dot_dimension_numbers<[1], [0], [0], [1], [0, 0, 1, 1], [], []>} : vector<8x6xf32>, vector<6x32xf32>, vector<8x32xf32> -> vector<8x32xf32>
    %c0_3 = arith.constant 0 : index
    %c0_4 = arith.constant 0 : index
    %3 = vector.load %arg3[%c0_3, %c0_4] : memref<1x32xf32, #tpu.memory_space<vmem>>, vector<1x32xf32>
    %4 = vector.broadcast %3 : vector<1x32xf32> to vector<8x32xf32>
    %5 = arith.addf %2, %4 : vector<8x32xf32>
    %cst_5 = arith.constant 0.000000e+00 : f32
    %6 = vector.broadcast %cst_5 : f32 to vector<8x32xf32>
    %7 = arith.maximumf %5, %6 : vector<8x32xf32>
    %c0_6 = arith.constant 0 : index
    %c0_7 = arith.constant 0 : index
    %8 = vector.load %arg4[%c0_6, %c0_7] : memref<32x16xf32, #tpu.memory_space<vmem>>, vector<32x16xf32>
    %cst_8 = arith.constant dense<0.000000e+00> : vector<8x16xf32>
    %9 = tpu.matmul %7, %8, %cst_8 {dimension_numbers = #tpu.dot_dimension_numbers<[1], [0], [0], [1], [0, 0, 1, 1], [], []>} : vector<8x32xf32>, vector<32x16xf32>, vector<8x16xf32> -> vector<8x16xf32>
    %c0_9 = arith.constant 0 : index
    %c0_10 = arith.constant 0 : index
    %10 = vector.load %arg5[%c0_9, %c0_10] : memref<1x16xf32, #tpu.memory_space<vmem>>, vector<1x16xf32>
    %11 = vector.broadcast %10 : vector<1x16xf32> to vector<8x16xf32>
    %12 = arith.addf %9, %11 : vector<8x16xf32>
    %cst_11 = arith.constant 0.000000e+00 : f32
    %13 = vector.broadcast %cst_11 : f32 to vector<8x16xf32>
    %14 = arith.maximumf %12, %13 : vector<8x16xf32>
    %c0_12 = arith.constant 0 : index
    %c0_13 = arith.constant 0 : index
    %15 = vector.load %arg6[%c0_12, %c0_13] : memref<16x1xf32, #tpu.memory_space<vmem>>, vector<16x1xf32>
    %cst_14 = arith.constant dense<0.000000e+00> : vector<8x1xf32>
    %16 = tpu.matmul %14, %15, %cst_14 {dimension_numbers = #tpu.dot_dimension_numbers<[1], [0], [0], [1], [0, 0, 1, 1], [], []>} : vector<8x16xf32>, vector<16x1xf32>, vector<8x1xf32> -> vector<8x1xf32>
    %c0_15 = arith.constant 0 : index
    %c0_16 = arith.constant 0 : index
    %17 = vector.load %arg7[%c0_15, %c0_16] : memref<1x1xf32, #tpu.memory_space<vmem>>, vector<1x1xf32>
    %18 = vector.broadcast %17 : vector<1x1xf32> to vector<8x1xf32>
    %19 = arith.addf %16, %18 : vector<8x1xf32>
    %c0_17 = arith.constant 0 : index
    %c0_18 = arith.constant 0 : index
    %20 = vector.load %arg8[%c0_17, %c0_18] : memref<8x1xf32, #tpu.memory_space<vmem>>, vector<8x1xf32>
    tpu.vector_store %arg8[%c0_17, %c0_18], %19 {strides = array<i32>} : memref<8x1xf32, #tpu.memory_space<vmem>>, vector<8x1xf32>,
    return
  }
  func.func @transform_0(%arg0: i32) -> (i32, i32) {
    %c0_i32 = arith.constant 0 : i32
    %c0_i32_0 = arith.constant 0 : i32
    return %arg0, %c0_i32 : i32, i32
  }
  func.func @transform_1(%arg0: i32) -> (i32, i32) {
    %c0_i32 = arith.constant 0 : i32
    %c0_i32_0 = arith.constant 0 : i32
    %c0_i32_1 = arith.constant 0 : i32
    return %c0_i32, %c0_i32_0 : i32, i32
  }
  func.func @transform_2(%arg0: i32) -> (i32, i32) {
    %c0_i32 = arith.constant 0 : i32
    %c0_i32_0 = arith.constant 0 : i32
    %c0_i32_1 = arith.constant 0 : i32
    return %c0_i32, %c0_i32_0 : i32, i32
  }
  func.func @transform_3(%arg0: i32) -> (i32, i32) {
    %c0_i32 = arith.constant 0 : i32
    %c0_i32_0 = arith.constant 0 : i32
    %c0_i32_1 = arith.constant 0 : i32
    return %c0_i32, %c0_i32_0 : i32, i32
  }
  func.func @transform_4(%arg0: i32) -> (i32, i32) {
    %c0_i32 = arith.constant 0 : i32
    %c0_i32_0 = arith.constant 0 : i32
    %c0_i32_1 = arith.constant 0 : i32
    return %c0_i32, %c0_i32_0 : i32, i32
  }
  func.func @transform_5(%arg0: i32) -> (i32, i32) {
    %c0_i32 = arith.constant 0 : i32
    %c0_i32_0 = arith.constant 0 : i32
    %c0_i32_1 = arith.constant 0 : i32
    return %c0_i32, %c0_i32_0 : i32, i32
  }
  func.func @transform_6(%arg0: i32) -> (i32, i32) {
    %c0_i32 = arith.constant 0 : i32
    %c0_i32_0 = arith.constant 0 : i32
    %c0_i32_1 = arith.constant 0 : i32
    return %c0_i32, %c0_i32_0 : i32, i32
  }
  func.func @transform_7(%arg0: i32) -> (i32, i32) {
    %c0_i32 = arith.constant 0 : i32
    %c0_i32_0 = arith.constant 0 : i32
    return %arg0, %c0_i32 : i32, i32
  }
}

</mosaic_0001>

<llo_original>
// kernel: tpu_custom_call.1
$region0: #{tpu_custom_call.1}
  #allocation0 [shape = 'u32[]', space=smem, size = 0x4, offset = 0x4, fixed_abs, tag = 'smem constant byte address 0x4 - core index']
  #allocation1 [shape = 'u32[72,128]{1,0:T(1,128)}', space=vmem, size = 0x9000, scoped, tag = 'internal scratch']
  #allocation2 [shape = 'f32[1,1]{1,0:T(1,128)S(1)}', space=vmem, size = 0x200, scoped, tag = 'scoped memory for tpu_custom_call.1']
  %s0 = inlined_call_operand.vmem [shape: f32[8,6], index: 0, kind: input, shape index: {}]
  %s1 = inlined_call_operand.vmem [shape: f32[6,32], index: 1, kind: input, shape index: {}]
  %s2 = inlined_call_operand.vmem [shape: f32[1,32], index: 2, kind: input, shape index: {}]
  %s3 = inlined_call_operand.vmem [shape: f32[32,16], index: 3, kind: input, shape index: {}]
  %s4 = inlined_call_operand.vmem [shape: f32[1,16], index: 4, kind: input, shape index: {}]
  %s5 = inlined_call_operand.vmem [shape: f32[16,1], index: 5, kind: input, shape index: {}]
  %s6 = inlined_call_operand.<no memory space> [shape: f32[1,1], index: 6, kind: input, shape index: {}]
  %s7 = inlined_call_operand.vmem [shape: f32[8,1], index: 7, kind: output, shape index: {}]
  %s8 = sld [smem:[#allocation0]]
  $region38: #{tpu_custom_call.1} parent=0
    _
  %s10 = ssub.s32 1, %s8
  %s11 = scalar_select 0, %s10, %s8
  %v12 = vstv %s6
  %13 = vst [vmem:[#allocation2] sm:$0x1] %v12
  // Predicated region
  $region2: #{tpu_custom_call.1} parent=0 // pred_check
    _
  $region3: #{tpu_custom_call.1} parent=0 // pred_check_branch
    %15 = sbr.rel (0) target = $region5
  $region4: #{tpu_custom_call.1} parent=0 // pred_region
    _
  $region5: #{tpu_custom_call.1} parent=0 // pred_fallthru
    _
  // Predicated region
  $region6: #{tpu_custom_call.1} parent=0 // pred_check
    _
  $region7: #{tpu_custom_call.1} parent=0 // pred_check_branch
    %17 = sbr.rel (0) target = $region9
  $region8: #{tpu_custom_call.1} parent=0 // pred_region
    _
  $region9: #{tpu_custom_call.1} parent=0 // pred_fallthru
    _
  // Predicated region
  $region10: #{tpu_custom_call.1} parent=0 // pred_check
    _
  $region11: #{tpu_custom_call.1} parent=0 // pred_check_branch
    %19 = sbr.rel (0) target = $region13
  $region12: #{tpu_custom_call.1} parent=0 // pred_region
    _
  $region13: #{tpu_custom_call.1} parent=0 // pred_fallthru
    _
  // Predicated region
  $region14: #{tpu_custom_call.1} parent=0 // pred_check
    _
  $region15: #{tpu_custom_call.1} parent=0 // pred_check_branch
    %21 = sbr.rel (0) target = $region17
  $region16: #{tpu_custom_call.1} parent=0 // pred_region
    _
  $region17: #{tpu_custom_call.1} parent=0 // pred_fallthru
    _
  // Predicated region
  $region18: #{tpu_custom_call.1} parent=0 // pred_check
    _
  $region19: #{tpu_custom_call.1} parent=0 // pred_check_branch
    %23 = sbr.rel (0) target = $region21
  $region20: #{tpu_custom_call.1} parent=0 // pred_region
    _
  $region21: #{tpu_custom_call.1} parent=0 // pred_fallthru
    _
  // Predicated region
  $region22: #{tpu_custom_call.1} parent=0 // pred_check
    _
  $region23: #{tpu_custom_call.1} parent=0 // pred_check_branch
    %25 = sbr.rel (0) target = $region25
  $region24: #{tpu_custom_call.1} parent=0 // pred_region
    _
  $region25: #{tpu_custom_call.1} parent=0 // pred_fallthru
    _
  // Predicated region
  $region26: #{tpu_custom_call.1} parent=0 // pred_check
    _
  $region27: #{tpu_custom_call.1} parent=0 // pred_check_branch
    %27 = sbr.rel (0) target = $region29
  $region28: #{tpu_custom_call.1} parent=0 // pred_region
    _
  $region29: #{tpu_custom_call.1} parent=0 // pred_fallthru
    _
  %v28 = vld [vmem:[%s0] sm:$0xff]
  %v29 = vld [vmem:[%s1] sm:$0x3f]
  %v30 = vld [vmem:[%s2] sm:$0x1]
  %v32 = vperm.slane %v30, 0
  %vm34 = vcmask 48128
  %v36 = vsel %vm34, %v28, 0
  %vm38 = vcmask 1045504
  %v40 = vsel %vm38, %v29, 0
  %42 = vmatpush.msra.mxu0 0.0
  %43 = vmatpush.msra.mxu0 0.0
  %44 = vmatpush.msra.mxu0 0.0
  %45 = vmatpush.msra.mxu0 0.0
  %46 = vmatpush.msra.mxu0 0.0
  %47 = vmatpush.msra.mxu0 0.0
  %48 = vmatpush.msra.mxu0 0.0
  %49 = vmatpush.msra.mxu0 0.0
  %50 = vmatpush.msra.mxu0 0.0
  %51 = vmatpush.msra.mxu0 0.0
  %52 = vmatpush.msra.mxu0 0.0
  %53 = vmatpush.msra.mxu0 0.0
  %54 = vmatpush.msra.mxu0 0.0
  %55 = vmatpush.msra.mxu0 0.0
  %56 = vmatpush.msra.mxu0 0.0
  %57 = vmatpush.msra.mxu0 %v40
  %58 = vmatmul.f32.gmra.mxu0 %v36
  %v59 = vpop.f32.mrf.mxu0
  %v60 = vadd.f32 %v32, %v59
  %61 = vdwg.mxu0
  %v62 = vmax.f32 %v60, 0.0
  %v63 = vld [vmem:[%s3] sm:$0xff]
  %v64 = vld [vmem:[%s3 + $0x8] sm:$0xff]
  %v65 = vld [vmem:[%s3 + $0x10] sm:$0xff]
  %v66 = vld [vmem:[%s3 + $0x18] sm:$0xff]
  %v67 = vld [vmem:[%s4] sm:$0x1]
  %v69 = vperm.slane %v67, 0
  %vm71 = vcmask 261120
  %v73 = vsel %vm71, %v62, 0
  %75 = vmatpush.msra.mxu0 0.0
  %76 = vmatpush.msra.mxu0 0.0
  %77 = vmatpush.msra.mxu0 0.0
  %78 = vmatpush.msra.mxu0 0.0
  %79 = vmatpush.msra.mxu0 0.0
  %80 = vmatpush.msra.mxu0 0.0
  %81 = vmatpush.msra.mxu0 0.0
  %82 = vmatpush.msra.mxu0 0.0
  %83 = vmatpush.msra.mxu0 0.0
  %84 = vmatpush.msra.mxu0 0.0
  %85 = vmatpush.msra.mxu0 0.0
  %86 = vmatpush.msra.mxu0 0.0
  %87 = vmatpush.msra.mxu0 %v66
  %88 = vmatpush.msra.mxu0 %v65
  %89 = vmatpush.msra.mxu0 %v64
  %90 = vmatpush.msra.mxu0 %v63
  %91 = vmatmul.f32.gmra.mxu0 %v73
  %v92 = vpop.f32.mrf.mxu0
  %v93 = vadd.f32 %v69, %v92
  %94 = vdwg.mxu0
  %v95 = vmax.f32 %v93, 0.0
  %v96 = vld [vmem:[%s5] sm:$0xff]
  %v97 = vld [vmem:[%s5 + $0x8] sm:$0xff]
  %v98 = vld [vmem:[#allocation2] sm:$0x1]
  %v100 = vperm.slane %v98, 0
  %vm102 = vcmask 130048
  %v104 = vsel %vm102, %v95, 0
  %106 = vmatpush.msra.mxu0 0.0
  %107 = vmatpush.msra.mxu0 0.0
  %108 = vmatpush.msra.mxu0 0.0
  %109 = vmatpush.msra.mxu0 0.0
  %110 = vmatpush.msra.mxu0 0.0
  %111 = vmatpush.msra.mxu0 0.0
  %112 = vmatpush.msra.mxu0 0.0
  %113 = vmatpush.msra.mxu0 0.0
  %114 = vmatpush.msra.mxu0 0.0
  %115 = vmatpush.msra.mxu0 0.0
  %116 = vmatpush.msra.mxu0 0.0
  %117 = vmatpush.msra.mxu0 0.0
  %118 = vmatpush.msra.mxu0 0.0
  %119 = vmatpush.msra.mxu0 0.0
  %120 = vmatpush.msra.mxu0 %v97
  %121 = vmatpush.msra.mxu0 %v96
  %122 = vmatmul.f32.gmra.mxu0 %v104
  %v123 = vpop.f32.mrf.mxu0
  %v124 = vadd.f32 %v100, %v123
  %125 = vdwg.mxu0
  %vm126 = vcmask 7168
  %127 = vst.msk [vmem:[%s7] sm:$0xff] %vm126, %v124
  // Predicated region
  $region30: #{tpu_custom_call.1} parent=0 // pred_check
    _
  $region31: #{tpu_custom_call.1} parent=0 // pred_check_branch
    %129 = sbr.rel (0) target = $region33
  $region32: #{tpu_custom_call.1} parent=0 // pred_region
    _
  $region33: #{tpu_custom_call.1} parent=0 // pred_fallthru
    _
  // Predicated region
  $region34: #{tpu_custom_call.1} parent=0 // pred_check
    _
  $region35: #{tpu_custom_call.1} parent=0 // pred_check_branch
    %131 = sbr.rel (0) target = $region37
  $region36: #{tpu_custom_call.1} parent=0 // pred_region
    _
  $region37: #{tpu_custom_call.1} parent=0 // pred_fallthru
    _

</llo_original>
